<compile_context>
chip_gen: v6e
topology: v6e:2x2x1
jax: 0.10.0
libtpu: 0.0.40
codegen_flags: <defaults>
</compile_context>

<pallas_src>
import functools

import jax
import jax.numpy as jnp
import numpy as np
from jax.experimental import pallas as pl
from jax.experimental.pallas import tpu as pltpu


# --------------------------------------------------------------------------- #
# Kernel
# --------------------------------------------------------------------------- #
def _decoder_block_kernel(ids_ref, cnt_ref, x_ref, w_ref, gb_ref, o_ref, *,
                          eps, inv_batch):
    # grid = (F_out tiles [parallel], K-block slots [arbitrary, reduction])
    # ids_ref: (nj, nk_max) int32 SMEM  -- which K block each slot maps to
    # cnt_ref: (nj,)        int32 SMEM  -- number of valid K blocks per tile
    # x_ref:   (B_pad, tk)  bf16
    # w_ref:   (tk, tn)     bf16        (masked, pre-transposed weight)
    # gb_ref:  (8, tn)      f32         row 0 = gamma, row 1 = beta
    # o_ref:   (B_pad, tn)  f32         resident across k -> used as accumulator
    j = pl.program_id(0)
    k = pl.program_id(1)

    @pl.when(k == 0)
    def _():
        o_ref[...] = jnp.zeros_like(o_ref)

    # Skip padded (duplicate) K-block slots: only counts[j] slots are real.
    @pl.when(k < cnt_ref[j])
    def _():
        o_ref[...] += jnp.dot(x_ref[...], w_ref[...],
                              preferred_element_type=jnp.float32)

    @pl.when(k == pl.num_programs(1) - 1)
    def _():
        y = o_ref[...]
        # Padded batch rows are exactly zero (zero x rows, no bias), so plain
        # sums divided by the *true* batch size give exact training-mode stats.
        mean = jnp.sum(y, axis=0, keepdims=True) * inv_batch
        ex2 = jnp.sum(y * y, axis=0, keepdims=True) * inv_batch
        var = jnp.maximum(ex2 - mean * mean, 0.0)
        y_hat = (y - mean) * jax.lax.rsqrt(var + eps)
        z = gb_ref[0:1, :] * y_hat + gb_ref[1:2, :]
        # Swish
        o_ref[...] = z * jax.nn.sigmoid(z)


# --------------------------------------------------------------------------- #
# Host-side helpers (one-time parameter prep)
# --------------------------------------------------------------------------- #
def _round_up(v, m):
    return (v + m - 1) // m * m


def _pick_tn(f_out_pad):
    # Guarantee >=2 F_out tiles whenever possible so dimension_semantics
    # "parallel" actually shards across v7x's two TensorCores; keep tn as
    # large as possible otherwise (256-wide MXU on v6e/v7x).
    if f_out_pad <= 128:
        return f_out_pad
    if f_out_pad == 256:
        return 128
    half = f_out_pad // 2
    for c in (512, 256, 128):
        if c <= half and f_out_pad % c == 0:
            return c
    return 128


def _pick_tk(f_in_pad):
    # Largest MXU-friendly K tile, but prefer >=2 K blocks so the block-sparse
    # K selection has something to skip.
    for c in (512, 256, 128):
        if f_in_pad % c == 0 and f_in_pad // c >= 2:
            return c
    return f_in_pad


def _vmem_block_bytes(b_pad, tk, tn):
    out_blk = b_pad * tn * 4 * 2   # f32 resident output/accumulator (dbl-buf)
    x_blk = b_pad * tk * 2 * 2     # bf16 activations (dbl-buf)
    w_blk = tk * tn * 2 * 2        # bf16 weights (dbl-buf)
    gb_blk = 8 * tn * 4 * 2
    return out_blk + x_blk + w_blk + gb_blk


def make_kernel_mask(f_out, f_in, kernel_size):
    """Deterministic banded sparse mask: each output feature is connected to
    `kernel_size` consecutive (edge-clamped) input features.
    TODO(synk): replace with AutoSparseLinear's real mask when available."""
    mask = np.zeros((f_out, f_in), dtype=np.float32)
    ks = min(kernel_size, f_in)
    for o in range(f_out):
        start = min((o * f_in) // f_out, f_in - ks)
        mask[o, start:start + ks] = 1.0
    return jnp.asarray(mask)


def prepare_decoder_block_params(weight, kernel_mask, gamma, beta,
                                 input_format, output_format, batch_size,
                                 vmem_budget_bytes=40 * 1024 * 1024):
    """One-time (host-side) parameter preparation: fold the static sparsity
    mask into the weight, transpose to MXU-native (K, N), pad, cast to bf16,
    fuse gamma/beta, and build the per-F_out-tile nonzero-K-block tables used
    for block-sparse K selection via scalar prefetch."""
    f_in = input_format[0] * input_format[1]
    f_out = output_format[0] * output_format[1]
    f_in_pad = _round_up(f_in, 128)
    f_out_pad = _round_up(f_out, 128)
    b_pad = max(_round_up(batch_size, 16), 16)

    # ---- tile selection with a VMEM budget (v7x has only 64 MiB/TC) ----
    tn = _pick_tn(f_out_pad)
    tk = _pick_tk(f_in_pad)
    while _vmem_block_bytes(b_pad, tk, tn) > vmem_budget_bytes and (tk > 128 or tn > 128):
        if tk > 128:
            tk //= 2
        else:
            tn //= 2
    nj = f_out_pad // tn
    nk = f_in_pad // tk

    # ---- masked, transposed, padded bf16 weight (done ONCE, not per call) ----
    w = np.asarray(weight, np.float32) * np.asarray(kernel_mask, np.float32)
    w_t = np.zeros((f_in_pad, f_out_pad), np.float32)
    w_t[:f_in, :f_out] = w.T
    w_t_dev = jnp.asarray(w_t).astype(jnp.bfloat16)

    # ---- fused gamma/beta (single (8, F_out_pad) stream) ----
    gb = np.zeros((8, f_out_pad), np.float32)
    gb[0, :f_out] = np.asarray(gamma, np.float32).reshape(-1)
    gb[0, f_out:] = 1.0
    gb[1, :f_out] = np.asarray(beta, np.float32).reshape(-1)
    gb_dev = jnp.asarray(gb)

    # ---- block-sparse K tables (pattern-agnostic: derived from the mask) ----
    m_t = np.zeros((f_in_pad, f_out_pad), dtype=bool)
    m_t[:f_in, :f_out] = (np.asarray(kernel_mask) != 0).T
    blk_nz = m_t.reshape(nk, tk, nj, tn).any(axis=(1, 3)).T   # (nj, nk)
    counts = blk_nz.sum(axis=1).astype(np.int32)              # (nj,)
    nk_max = max(int(counts.max()), 1)
    ids = np.zeros((nj, nk_max), np.int32)
    for jj in range(nj):
        kl = np.nonzero(blk_nz[jj])[0].astype(np.int32)
        if kl.size == 0:
            kl = np.zeros((1,), np.int32)
        ids[jj, :kl.size] = kl
        ids[jj, kl.size:] = kl[-1]   # padded slots repeat last block (skipped)

    # ---- scoped VMEM limit: generous on v5e/v6e, capped under v7x's 64 MiB --
    try:
        phys_vmem = int(pltpu.get_tpu_info().vmem_capacity_bytes)
    except Exception:  # pragma: no cover - conservative fallback
        phys_vmem = 64 * 1024 * 1024
    vmem_limit = int(min(64 * 1024 * 1024,
                         max(32 * 1024 * 1024, phys_vmem * 3 // 4)))

    return {
        "w_t": w_t_dev,
        "gb": gb_dev,
        "ids": jnp.asarray(ids),
        "counts": jnp.asarray(counts),
        "tk": tk, "tn": tn, "nk_max": nk_max,
        "f_in": f_in, "f_out": f_out,
        "f_in_pad": f_in_pad, "f_out_pad": f_out_pad,
        "output_format": tuple(output_format),
        "vmem_limit_bytes": vmem_limit,
    }


# --------------------------------------------------------------------------- #
# Forward wrapper
# --------------------------------------------------------------------------- #
def decoder_block_forward(x, params, eps=1e-5):
    B = x.shape[0]
    f_in, f_out = params["f_in"], params["f_out"]
    f_in_pad, f_out_pad = params["f_in_pad"], params["f_out_pad"]
    tk, tn, nk_max = params["tk"], params["tn"], params["nk_max"]
    c_out, d_out = params["output_format"]

    # bf16 packs two rows per sublane -> pad batch to a multiple of 16.
    b_pad = max(_round_up(B, 16), 16)
    x2 = x.reshape(B, f_in).astype(jnp.float32)
    x2 = jnp.pad(x2, ((0, b_pad - B), (0, f_in_pad - f_in))).astype(jnp.bfloat16)

    grid = (f_out_pad // tn, nk_max)

    out = pl.pallas_call(
        functools.partial(_decoder_block_kernel, eps=eps, inv_batch=1.0 / B),
        out_shape=jax.ShapeDtypeStruct((b_pad, f_out_pad), jnp.float32),
        grid_spec=pltpu.PrefetchScalarGridSpec(
            num_scalar_prefetch=2,            # ids, counts -> SMEM
            grid=grid,
            in_specs=[
                # x: only the K blocks in this output tile's band are streamed.
                pl.BlockSpec((b_pad, tk), lambda j, k, ids, cnt: (0, ids[j, k])),
                # W^T: data-dependent block-sparse K selection.
                pl.BlockSpec((tk, tn), lambda j, k, ids, cnt: (ids[j, k], j)),
                # fused gamma/beta.
                pl.BlockSpec((8, tn), lambda j, k, ids, cnt: (0, j)),
            ],
            out_specs=pl.BlockSpec((b_pad, tn), lambda j, k, ids, cnt: (0, j)),
        ),
        compiler_params=pltpu.CompilerParams(
            dimension_semantics=("parallel", "arbitrary"),
            vmem_limit_bytes=params["vmem_limit_bytes"],
        ),
    )(params["ids"], params["counts"], x2, params["w_t"], params["gb"])

    out = out[:B, :f_out]
    return out.reshape(B, c_out, d_out)


# --------------------------------------------------------------------------- #
# Pure-JAX reference (module semantics, incl. the bias that cancels under BN)
# --------------------------------------------------------------------------- #
def reference_forward(x, weight, kernel_mask, bias, gamma, beta,
                      output_format, eps=1e-5):
    """Mirrors the kernel's bf16 matmul / f32 accumulation so the comparison
    isolates the Pallas structure (block-sparse tiling, BN, Swish)."""
    B = x.shape[0]
    w_t = (weight * kernel_mask).T
    y = jnp.dot(x.reshape(B, -1).astype(jnp.bfloat16),
                w_t.astype(jnp.bfloat16),
                preferred_element_type=jnp.float32) + bias.reshape(1, -1)
    mean = jnp.mean(y, axis=0, keepdims=True)
    var = jnp.mean((y - mean) ** 2, axis=0, keepdims=True)
    z = gamma.reshape(1, -1) * (y - mean) / jnp.sqrt(var + eps) + beta.reshape(1, -1)
    z = z * jax.nn.sigmoid(z)
    return z.reshape(B, output_format[0], output_format[1])


if __name__ == "__main__":
    # Small shapes consistent with the module's forward: x is (B, C_in, D_in).
    input_format = (8, 32)     # (C_in, D_in)   -> F_in  = 256
    output_format = (8, 32)    # (C_out, D_out) -> F_out = 256
    kernel_size = 4
    B = 6
    f_in = input_format[0] * input_format[1]
    f_out = output_format[0] * output_format[1]

    key = jax.random.PRNGKey(0)
    kx, kw, kb, kg, kbeta = jax.random.split(key, 5)

    x = jax.random.normal(kx, (B, input_format[0], input_format[1]), jnp.float32)

    # Deterministic synthetic parameters (no checkpoint load).
    weight = jax.random.normal(kw, (f_out, f_in), jnp.float32) * (1.0 / np.sqrt(f_in))
    bias = 0.1 * jax.random.normal(kb, (1, f_out), jnp.float32)
    gamma = 1.0 + 0.1 * jax.random.normal(kg, (1, f_out), jnp.float32)
    beta = 0.1 * jax.random.normal(kbeta, (1, f_out), jnp.float32)
    kernel_mask = make_kernel_mask(f_out, f_in, kernel_size)

    # One-time parameter prep (mask fold / transpose / pad / bf16 / block tables).
    params = prepare_decoder_block_params(weight, kernel_mask, gamma, beta,
                                          input_format, output_format,
                                          batch_size=B)

    out = decoder_block_forward(x, params)
    out = jax.block_until_ready(out)

    # Reference applies the bias; the kernel drops it because it cancels exactly
    # under the BatchNorm batch-mean subtraction.
    ref = reference_forward(x, weight, kernel_mask, bias, gamma, beta,
                            output_format)
    assert out.shape == (B, output_format[0], output_format[1])
    np.testing.assert_allclose(np.asarray(out), np.asarray(ref),
                               rtol=2e-3, atol=2e-3)
    print("KERNEL_OK")
</pallas_src>

<mosaic_0001>
module attributes {stable_mosaic.version = 11 : i64} {
  func.func @_decoder_block_kernel(%arg0: i32, %arg1: i32, %arg2: memref<2x2xi32, #tpu.memory_space<smem>>, %arg3: memref<2xi32, #tpu.memory_space<smem>>, %arg4: memref<16x128xbf16, #tpu.memory_space<vmem>>, %arg5: memref<128x128xbf16, #tpu.memory_space<vmem>>, %arg6: memref<8x128xf32, #tpu.memory_space<vmem>>, %arg7: memref<16x128xf32, #tpu.memory_space<vmem>>) attributes {dimension_semantics = [#tpu.dimension_semantics<parallel>, #tpu.dimension_semantics<arbitrary>], iteration_bounds = array<i64: 2, 2>, scalar_prefetch = 2 : i64, scratch_operands = 0 : i64, tpu.core_type = #tpu.core_type<tc>, window_params = [{transform_indices = @transform_0, window_bounds = array<i64: 16, 128>}, {transform_indices = @transform_1, window_bounds = array<i64: 128, 128>}, {transform_indices = @transform_2, window_bounds = array<i64: 8, 128>}, {transform_indices = @transform_3, window_bounds = array<i64: 16, 128>}]} {
    %c0_i32 = arith.constant 0 : i32
    %0 = arith.cmpi eq, %arg1, %c0_i32 : i32
    %1 = arith.extui %0 : i1 to i32
    %c0_i32_0 = arith.constant 0 : i32
    %2 = arith.cmpi ne, %1, %c0_i32_0 : i32
    scf.if %2 {
      %cst = arith.constant 0.000000e+00 : f32
      %11 = vector.broadcast %cst : f32 to vector<16x128xf32>
      %c0 = arith.constant 0 : index
      %c0_3 = arith.constant 0 : index
      %12 = vector.load %arg7[%c0, %c0_3] : memref<16x128xf32, #tpu.memory_space<vmem>>, vector<16x128xf32>
      tpu.vector_store %arg7[%c0, %c0_3], %11 {strides = array<i32>} : memref<16x128xf32, #tpu.memory_space<vmem>>, vector<16x128xf32>,
    } else {
    }
    %3 = arith.index_cast %arg0 : i32 to index
    %4 = memref.load %arg3[%3] : memref<2xi32, #tpu.memory_space<smem>>
    %5 = arith.cmpi slt, %arg1, %4 : i32
    %6 = arith.extui %5 : i1 to i32
    %c0_i32_1 = arith.constant 0 : i32
    %7 = arith.cmpi ne, %6, %c0_i32_1 : i32
    scf.if %7 {
      %c0 = arith.constant 0 : index
      %c0_3 = arith.constant 0 : index
      %11 = vector.load %arg7[%c0, %c0_3] : memref<16x128xf32, #tpu.memory_space<vmem>>, vector<16x128xf32>
      %c0_4 = arith.constant 0 : index
      %c0_5 = arith.constant 0 : index
      %12 = vector.load %arg4[%c0_4, %c0_5] : memref<16x128xbf16, #tpu.memory_space<vmem>>, vector<16x128xbf16>
      %c0_6 = arith.constant 0 : index
      %c0_7 = arith.constant 0 : index
      %13 = vector.load %arg5[%c0_6, %c0_7] : memref<128x128xbf16, #tpu.memory_space<vmem>>, vector<128x128xbf16>
      %cst = arith.constant dense<0.000000e+00> : vector<16x128xf32>
      %14 = tpu.matmul %12, %13, %cst {dimension_numbers = #tpu.dot_dimension_numbers<[1], [0], [0], [1], [0, 0, 1, 1], [], []>} : vector<16x128xbf16>, vector<128x128xbf16>, vector<16x128xf32> -> vector<16x128xf32>
      %15 = arith.addf %11, %14 : vector<16x128xf32>
      %c0_8 = arith.constant 0 : index
      %c0_9 = arith.constant 0 : index
      %16 = vector.load %arg7[%c0_8, %c0_9] : memref<16x128xf32, #tpu.memory_space<vmem>>, vector<16x128xf32>
      tpu.vector_store %arg7[%c0_8, %c0_9], %15 {strides = array<i32>} : memref<16x128xf32, #tpu.memory_space<vmem>>, vector<16x128xf32>,
    } else {
    }
    %c1_i32 = arith.constant 1 : i32
    %8 = arith.cmpi eq, %arg1, %c1_i32 : i32
    %9 = arith.extui %8 : i1 to i32
    %c0_i32_2 = arith.constant 0 : i32
    %10 = arith.cmpi ne, %9, %c0_i32_2 : i32
    scf.if %10 {
      %c0 = arith.constant 0 : index
      %c0_3 = arith.constant 0 : index
      %11 = vector.load %arg7[%c0, %c0_3] : memref<16x128xf32, #tpu.memory_space<vmem>>, vector<16x128xf32>
      %cst = arith.constant dense<0.000000e+00> : vector<128xf32>
      %12 = vector.multi_reduction <add>, %11, %cst [0] : vector<16x128xf32> to vector<128xf32>
      %13 = vector.shape_cast %12 : vector<128xf32> to vector<1x128xf32>
      %cst_4 = arith.constant 0.166666672 : f32
      %14 = vector.broadcast %cst_4 : f32 to vector<1x128xf32>
      %15 = arith.mulf %13, %14 : vector<1x128xf32>
      %16 = arith.mulf %11, %11 : vector<16x128xf32>
      %cst_5 = arith.constant dense<0.000000e+00> : vector<128xf32>
      %17 = vector.multi_reduction <add>, %16, %cst_5 [0] : vector<16x128xf32> to vector<128xf32>
      %18 = vector.shape_cast %17 : vector<128xf32> to vector<1x128xf32>
      %cst_6 = arith.constant 0.166666672 : f32
      %19 = vector.broadcast %cst_6 : f32 to vector<1x128xf32>
      %20 = arith.mulf %18, %19 : vector<1x128xf32>
      %21 = arith.mulf %15, %15 : vector<1x128xf32>
      %22 = arith.subf %20, %21 : vector<1x128xf32>
      %cst_7 = arith.constant 0.000000e+00 : f32
      %23 = vector.broadcast %cst_7 : f32 to vector<1x128xf32>
      %24 = arith.maximumf %22, %23 : vector<1x128xf32>
      %25 = vector.broadcast %15 : vector<1x128xf32> to vector<16x128xf32>
      %26 = arith.subf %11, %25 : vector<16x128xf32>
      %cst_8 = arith.constant 9.99999974E-6 : f32
      %27 = vector.broadcast %cst_8 : f32 to vector<1x128xf32>
      %28 = arith.addf %24, %27 : vector<1x128xf32>
      %29 = math.rsqrt %28 : vector<1x128xf32>
      %30 = vector.broadcast %29 : vector<1x128xf32> to vector<16x128xf32>
      %31 = arith.mulf %26, %30 : vector<16x128xf32>
      %c0_9 = arith.constant 0 : index
      %c0_10 = arith.constant 0 : index
      %32 = vector.load %arg6[%c0_9, %c0_10] : memref<8x128xf32, #tpu.memory_space<vmem>>, vector<1x128xf32>
      %33 = vector.broadcast %32 : vector<1x128xf32> to vector<16x128xf32>
      %34 = arith.mulf %33, %31 : vector<16x128xf32>
      %c1 = arith.constant 1 : index
      %c0_11 = arith.constant 0 : index
      %35 = vector.load %arg6[%c1, %c0_11] : memref<8x128xf32, #tpu.memory_space<vmem>>, vector<1x128xf32>
      %36 = vector.broadcast %35 : vector<1x128xf32> to vector<16x128xf32>
      %37 = arith.addf %34, %36 : vector<16x128xf32>
      %38 = arith.negf %37 : vector<16x128xf32>
      %39 = math.exp %38 : vector<16x128xf32>
      %cst_12 = arith.constant 1.000000e+00 : f32
      %40 = vector.broadcast %cst_12 : f32 to vector<16x128xf32>
      %41 = arith.addf %40, %39 : vector<16x128xf32>
      %42 = arith.divf %40, %41 : vector<16x128xf32>
      %43 = arith.mulf %37, %42 : vector<16x128xf32>
      %c0_13 = arith.constant 0 : index
      %c0_14 = arith.constant 0 : index
      %44 = vector.load %arg7[%c0_13, %c0_14] : memref<16x128xf32, #tpu.memory_space<vmem>>, vector<16x128xf32>
      tpu.vector_store %arg7[%c0_13, %c0_14], %43 {strides = array<i32>} : memref<16x128xf32, #tpu.memory_space<vmem>>, vector<16x128xf32>,
    } else {
    }
    return
  }
  func.func @transform_0(%arg0: i32, %arg1: i32, %arg2: memref<2x2xi32, #tpu.memory_space<smem>>, %arg3: memref<2xi32, #tpu.memory_space<smem>>) -> (i32, i32) {
    %0 = arith.index_cast %arg0 : i32 to index
    %1 = arith.index_cast %arg1 : i32 to index
    %2 = memref.load %arg2[%0, %1] : memref<2x2xi32, #tpu.memory_space<smem>>
    %c0_i32 = arith.constant 0 : i32
    %c0_i32_0 = arith.constant 0 : i32
    return %c0_i32, %2 : i32, i32
  }
  func.func @transform_1(%arg0: i32, %arg1: i32, %arg2: memref<2x2xi32, #tpu.memory_space<smem>>, %arg3: memref<2xi32, #tpu.memory_space<smem>>) -> (i32, i32) {
    %0 = arith.index_cast %arg0 : i32 to index
    %1 = arith.index_cast %arg1 : i32 to index
    %2 = memref.load %arg2[%0, %1] : memref<2x2xi32, #tpu.memory_space<smem>>
    %c0_i32 = arith.constant 0 : i32
    return %2, %arg0 : i32, i32
  }
  func.func @transform_2(%arg0: i32, %arg1: i32, %arg2: memref<2x2xi32, #tpu.memory_space<smem>>, %arg3: memref<2xi32, #tpu.memory_space<smem>>) -> (i32, i32) {
    %c0_i32 = arith.constant 0 : i32
    %c0_i32_0 = arith.constant 0 : i32
    return %c0_i32, %arg0 : i32, i32
  }
  func.func @transform_3(%arg0: i32, %arg1: i32, %arg2: memref<2x2xi32, #tpu.memory_space<smem>>, %arg3: memref<2xi32, #tpu.memory_space<smem>>) -> (i32, i32) {
    %c0_i32 = arith.constant 0 : i32
    %c0_i32_0 = arith.constant 0 : i32
    return %c0_i32, %arg0 : i32, i32
  }
}

</mosaic_0001>

<llo_original>
// kernel: tpu_custom_call.1
$region0: #{tpu_custom_call.1}
  #allocation0 [shape = 'u32[]', space=smem, size = 0x4, offset = 0x4, fixed_abs, tag = 'smem constant byte address 0x4 - core index']
  #allocation1 [shape = 'u32[144,128]{1,0:T(1,128)}', space=vmem, size = 0x12000, scoped, tag = 'internal scratch']
  #allocation2 [shape = 's32[1]{0}', space=sflag, size = 0x4, scoped, tag = 'scoped memory for tpu_custom_call.1']
  #allocation3 [shape = 'u8[1024]{0}', space=smem, size = 0x400, scoped, tag = 'prefetched SMEM operand 0']
  #allocation4 [shape = 'u8[512]{0}', space=smem, size = 0x200, scoped, tag = 'prefetched SMEM operand 1']
  %s0 = inlined_call_operand.hbm [shape: s32[2,2], index: 0, kind: input, shape index: {}]
  %s1 = inlined_call_operand.vmem [shape: s32[2], index: 1, kind: input, shape index: {}]
  %s2 = inlined_call_operand.hbm [shape: bf16[16,256], index: 2, kind: input, shape index: {}]
  %s3 = inlined_call_operand.hbm [shape: bf16[256,256], index: 3, kind: input, shape index: {}]
  %s4 = inlined_call_operand.hbm [shape: f32[8,256], index: 4, kind: input, shape index: {}]
  %s5 = inlined_call_operand.hbm [shape: f32[16,256], index: 5, kind: output, shape index: {}]
  %s6 = sld [smem:[#allocation0]]
  $region69: #{tpu_custom_call.1} parent=0
    _
  %s8 = ssub.s32 1, %s6
  %s9 = scalar_select 0, %s8, %s6
  %11 = dma.hbm_to_smem %s0, 32, [#allocation3], [#allocation2]
  %s12 = sshll.u32 %s1, 4
  %s13 = int_to_ptr.vmem [resolvable:$true] %s12
  %15 = dma.vmem_to_smem %s13, 16, [#allocation4], [#allocation2]
  %16 = dma.done [#allocation2], 48
  %17 = sfence
  $region1: #{tpu_custom_call.1} parent=0
    #allocation5 [shape = 'u8[8192]{0}', space=vmem, size = 0x2000, scoped, tag = 'input window, operand 2']
    #allocation6 [shape = 's32[2]{0}', space=sflag, size = 0x8, scoped, tag = 'scoped memory for tpu_custom_call.1']
    #allocation7 [shape = 's32[2]{0}', space=sflag, size = 0x8, scoped, tag = 'scoped memory for tpu_custom_call.1']
    #allocation8 [shape = 'u8[65536]{0}', space=vmem, size = 0x10000, scoped, tag = 'input window, operand 3']
    #allocation9 [shape = 's32[2]{0}', space=sflag, size = 0x8, scoped, tag = 'scoped memory for tpu_custom_call.1']
    #allocation10 [shape = 'u8[8192]{0}', space=vmem, size = 0x2000, scoped, tag = 'input window, operand 4']
    #allocation11 [shape = 'u8[16384]{0}', space=vmem, size = 0x4000, scoped, tag = 'output window, operand 0']
    %18 = vsyncpa [#allocation6], 0
    %s19 = scalar_lea.sflag [#allocation6], 1
    %20 = vsyncpa %s19, 0
    %21 = vsyncpa [#allocation9], 0
    %s22 = scalar_lea.sflag [#allocation9], 1
    %23 = vsyncpa %s22, 0
    %24 = vsyncpa [#allocation7], 0
    %s25 = scalar_lea.sflag [#allocation7], 1
    %26 = vsyncpa %s25, 0
    loop: start=0, step=1, limit=6
    $region2: #{tpu_custom_call.1} parent=1 // loop_pre_header
      _
    $region3: #{tpu_custom_call.1} parent=1 // loop_header
      %s28 = sphi 0, %s32
      %p29 = scmp.ge.s32.totalorder %s28, 6
      %s35 = sphi 0, %s47
      %s36 = sphi 0, %s43
      %s37 = sphi 0, %s35
      %s38 = sphi 0, %s36
      %s39 = sphi 0, %s37
      %s40 = sphi 0, %s38
      %s66 = sphi 0, %s68
      %s69 = sphi 0, %s66
      %s70 = sphi 0, %s69
      %s86 = sphi 0, %s70
      %s110 = sphi 0, %s112
      %s113 = sphi 0, %s110
      %s114 = sphi 0, %s113
      %s130 = sphi 0, %s114
      %s136 = sphi 0, %s138
      %s139 = sphi 0, %s136
      %s140 = sphi 0, %s139
      %s156 = sphi 0, %s140
      %s162 = sphi 0, %s164
      %s165 = sphi 0, %s162
      %s166 = sphi 0, %s165
      %s182 = sphi 0, %s166
    $region4: #{tpu_custom_call.1} parent=1 // loop_header_branch
      %31 = sbr.rel (%p29) target = $region8
    $region5: #{tpu_custom_call.1} parent=1 // loop_body
      %s33 = ssub.s32 %s28, 1
      %s34 = ssub.s32 %s28, 2
      %s41 = sadd.s32 1, %s36
      %p42 = scmp.ge.s32.totalorder %s41, 2
      %s43 = scalar_select %p42, 0, %s41
      %s44 = sadd.s32 1, %s35
      %s45 = scalar_select %p42, %s44, %s35
      %p46 = scmp.ge.s32.totalorder %s45, 2
      %s47 = scalar_select %p46, 0, %s45
      %s48 = sshra.s32 %s36, 7
      %s49 = sand.u32 %s36, 127
      %s50 = sadd.s32 %s48, %s35
      %s51 = smul.u32 %s50, 128
      %s52 = sshra.s32 %s36, 7
      %s53 = sand.u32 %s36, 127
      %s54 = sadd.s32 %s51, %s53
      %s55 = sld [smem:[#allocation3 + %s54]]
      %s56 = sshra.s32 %s43, 7
      %s57 = sand.u32 %s43, 127
      %s58 = sadd.s32 %s56, %s47
      %s59 = smul.u32 %s58, 128
      %s60 = sshra.s32 %s43, 7
      %s61 = sand.u32 %s43, 127
      %s62 = sadd.s32 %s59, %s61
      %s63 = sld [smem:[#allocation3 + %s62]]
      %s64 = ssub.s32 %s55, %s63
      %p65 = scmp.eq.s32.totalorder %s64, 0
      %s67 = sadd.s32 %s66, 1
      %s68 = scalar_select %p65, %s66, %s67
      %p71 = pneg %p65
      %p72 = scmp.eq.s32.totalorder %s28, 3
      %p73 = por %p71, %p72
      %p74 = scmp.ne.s32.totalorder %s66, %s69
      %p75 = scmp.eq.s32.totalorder %s28, 0
      %p76 = por %p74, %p75
      %p77 = scmp.ne.s32.totalorder %s66, %s69
      %p78 = scmp.eq.s32.totalorder %s33, 3
      %p79 = por %p77, %p78
      %p80 = scmp.ne.s32.totalorder %s69, %s70
      %p81 = scmp.eq.s32.totalorder %s33, 0
      %p82 = por %p80, %p81
      %p83 = scmp.ne.s32.totalorder %s69, %s70
      %p84 = scmp.eq.s32.totalorder %s34, 3
      %p85 = por %p83, %p84
      %p87 = scmp.ne.s32.totalorder %s70, %s86
      %p88 = scmp.eq.s32.totalorder %s34, 0
      %p89 = por %p87, %p88
      %s90 = sshra.s32 %s36, 7
      %s91 = sand.u32 %s36, 127
      %s92 = sadd.s32 %s90, %s35
      %s93 = smul.u32 %s92, 128
      %s94 = sshra.s32 %s36, 7
      %s95 = sand.u32 %s36, 127
      %s96 = sadd.s32 %s93, %s95
      %s97 = sld [smem:[#allocation3 + %s96]]
      %s98 = sshra.s32 %s43, 7
      %s99 = sand.u32 %s43, 127
      %s100 = sadd.s32 %s98, %s47
      %s101 = smul.u32 %s100, 128
      %s102 = sshra.s32 %s43, 7
      %s103 = sand.u32 %s43, 127
      %s104 = sadd.s32 %s101, %s103
      %s105 = sld [smem:[#allocation3 + %s104]]
      %s106 = ssub.s32 %s97, %s105
      %s107 = ssub.s32 %s35, %s47
      %s108 = sor.u32 %s106, %s107
      %p109 = scmp.eq.s32.totalorder %s108, 0
      %s111 = sadd.s32 %s110, 1
      %s112 = scalar_select %p109, %s110, %s111
      %p115 = pneg %p109
      %p116 = scmp.eq.s32.totalorder %s28, 3
      %p117 = por %p115, %p116
      %p118 = scmp.ne.s32.totalorder %s110, %s113
      %p119 = scmp.eq.s32.totalorder %s28, 0
      %p120 = por %p118, %p119
      %p121 = scmp.ne.s32.totalorder %s110, %s113
      %p122 = scmp.eq.s32.totalorder %s33, 3
      %p123 = por %p121, %p122
      %p124 = scmp.ne.s32.totalorder %s113, %s114
      %p125 = scmp.eq.s32.totalorder %s33, 0
      %p126 = por %p124, %p125
      %p127 = scmp.ne.s32.totalorder %s113, %s114
      %p128 = scmp.eq.s32.totalorder %s34, 3
      %p129 = por %p127, %p128
      %p131 = scmp.ne.s32.totalorder %s114, %s130
      %p132 = scmp.eq.s32.totalorder %s34, 0
      %p133 = por %p131, %p132
      %s134 = ssub.s32 %s35, %s47
      %p135 = scmp.eq.s32.totalorder %s134, 0
      %s137 = sadd.s32 %s136, 1
      %s138 = scalar_select %p135, %s136, %s137
      %p141 = pneg %p135
      %p142 = scmp.eq.s32.totalorder %s28, 3
      %p143 = por %p141, %p142
      %p144 = scmp.ne.s32.totalorder %s136, %s139
      %p145 = scmp.eq.s32.totalorder %s28, 0
      %p146 = por %p144, %p145
      %p147 = scmp.ne.s32.totalorder %s136, %s139
      %p148 = scmp.eq.s32.totalorder %s33, 3
      %p149 = por %p147, %p148
      %p150 = scmp.ne.s32.totalorder %s139, %s140
      %p151 = scmp.eq.s32.totalorder %s33, 0
      %p152 = por %p150, %p151
      %p153 = scmp.ne.s32.totalorder %s139, %s140
      %p154 = scmp.eq.s32.totalorder %s34, 3
      %p155 = por %p153, %p154
      %p157 = scmp.ne.s32.totalorder %s140, %s156
      %p158 = scmp.eq.s32.totalorder %s34, 0
      %p159 = por %p157, %p158
      %s160 = ssub.s32 %s35, %s47
      %p161 = scmp.eq.s32.totalorder %s160, 0
      %s163 = sadd.s32 %s162, 1
      %s164 = scalar_select %p161, %s162, %s163
      %p167 = pneg %p161
      %p168 = scmp.eq.s32.totalorder %s28, 3
      %p169 = por %p167, %p168
      %p170 = scmp.ne.s32.totalorder %s162, %s165
      %p171 = scmp.eq.s32.totalorder %s28, 0
      %p172 = por %p170, %p171
      %p173 = scmp.ne.s32.totalorder %s162, %s165
      %p174 = scmp.eq.s32.totalorder %s33, 3
      %p175 = por %p173, %p174
      %p176 = scmp.ne.s32.totalorder %s165, %s166
      %p177 = scmp.eq.s32.totalorder %s33, 0
      %p178 = por %p176, %p177
      %p179 = scmp.ne.s32.totalorder %s165, %s166
      %p180 = scmp.eq.s32.totalorder %s34, 3
      %p181 = por %p179, %p180
      %p183 = scmp.ne.s32.totalorder %s166, %s182
      %p184 = scmp.eq.s32.totalorder %s34, 0
      %p185 = por %p183, %p184
      %p186 = scmp.le.s32.totalorder 1, %s28
      %p187 = scmp.lt.s32.totalorder %s28, 5
      %p188 = pnand %p186, %p187
      %p189 = pneg %p188
      // Predicated region
      $region9: #{tpu_custom_call.1} parent=5 // pred_check
        _
      $region10: #{tpu_custom_call.1} parent=5 // pred_check_branch
        %191 = sbr.rel (%p188) target = $region12
      $region11: #{tpu_custom_call.1} parent=5 // pred_region
        %s192 = ssub.s32 %s28, 1
      $region12: #{tpu_custom_call.1} parent=5 // pred_fallthru
        _
      %p193 = scmp.lt.s32.totalorder %s28, 4
      // Predicated region
      $region13: #{tpu_custom_call.1} parent=5 // pred_check
        %p194 = pneg %p193
      $region14: #{tpu_custom_call.1} parent=5 // pred_check_branch
        %196 = sbr.rel (%p194) target = $region16
      $region15: #{tpu_custom_call.1} parent=5 // pred_region
        // Predicated region
        $region17: #{tpu_custom_call.1} parent=15 // pred_check
          %p197 = pneg %p76
        $region18: #{tpu_custom_call.1} parent=15 // pred_check_branch
          %199 = sbr.rel (%p197) target = $region20
        $region19: #{tpu_custom_call.1} parent=15 // pred_region
          %s200 = sand.u32 %s66, 1
          %s201 = scalar_lea.sflag [#allocation6], %s200
          %s202 = sand.u32 %s66, 1
          %s203 = smul.addr %s202, 8
          %s204 = scalar_lea.vmem [#allocation5], %s203
          %s205 = sshra.s32 %s36, 7
          %s206 = sand.u32 %s36, 127
          %s207 = sadd.s32 %s205, %s35
          %s208 = smul.u32 %s207, 128
          %s209 = sshra.s32 %s36, 7
          %s210 = sand.u32 %s36, 127
          %s211 = sadd.s32 %s208, %s210
          %s212 = sld [smem:[#allocation3 + %s211]]
          %s214 = ssub.s32 128, 128
          %215 = vsyncadd %s201, %s214
          %s216 = smul.addr %s212, 64
          %s217 = scalar_lea.hbm %s2, %s216
          %s218 = sshll.u32 %s204, 4
          %s219 = int_to_ptr.vmem [resolvable:$true] %s218
          %224 = dma.hbm_to_vmem [thread:$0]  %s217, 128, %s219, %s201, 128, 64, 4
        $region20: #{tpu_custom_call.1} parent=15 // pred_fallthru
          _
        // Predicated region
        $region21: #{tpu_custom_call.1} parent=15 // pred_check
          %p225 = pneg %p120
        $region22: #{tpu_custom_call.1} parent=15 // pred_check_branch
          %227 = sbr.rel (%p225) target = $region24
        $region23: #{tpu_custom_call.1} parent=15 // pred_region
          %s228 = sand.u32 %s28, 1
          %s229 = scalar_lea.sflag [#allocation9], %s228
          %s230 = sand.u32 %s110, 1
          %s231 = smul.addr %s230, 64
          %s232 = scalar_lea.vmem [#allocation8], %s231
          %s233 = sshra.s32 %s36, 7
          %s234 = sand.u32 %s36, 127
          %s235 = sadd.s32 %s233, %s35
          %s236 = smul.u32 %s235, 128
          %s237 = sshra.s32 %s36, 7
          %s238 = sand.u32 %s36, 127
          %s239 = sadd.s32 %s236, %s238
          %s240 = sld [smem:[#allocation3 + %s239]]
          %s241 = smul.u32 16, %s240
          %s243 = ssub.s32 1024, 1024
          %244 = vsyncadd %s229, %s243
          %s245 = smul.addr %s241, 2
          %s246 = sadd.s32 %s35, %s245
          %s247 = smul.addr %s246, 64
          %s248 = scalar_lea.hbm %s3, %s247
          %s249 = sshll.u32 %s232, 4
          %s250 = int_to_ptr.vmem [resolvable:$true] %s249
          %255 = dma.hbm_to_vmem [thread:$0]  %s248, 1024, %s250, %s229, 128, 64, 4
        $region24: #{tpu_custom_call.1} parent=15 // pred_fallthru
          _
        // Predicated region
        $region25: #{tpu_custom_call.1} parent=15 // pred_check
          %p256 = pneg %p146
        $region26: #{tpu_custom_call.1} parent=15 // pred_check_branch
          %258 = sbr.rel (%p256) target = $region28
        $region27: #{tpu_custom_call.1} parent=15 // pred_region
          %s259 = sand.u32 %s28, 1
          %s260 = scalar_lea.sflag [#allocation9], %s259
          %s261 = sand.u32 %s136, 1
          %s262 = smul.addr %s261, 8
          %s263 = scalar_lea.vmem [#allocation10], %s262
          %s265 = ssub.s32 128, 128
          %266 = vsyncadd %s260, %s265
          %s267 = smul.addr %s35, 128
          %s268 = scalar_lea.hbm %s4, %s267
          %s270 = sshll.u32 %s263, 4
          %s271 = int_to_ptr.vmem [resolvable:$true] %s270
          %273 = dma.hbm_to_vmem [thread:$0]  %s268, 128, %s271, %s260
        $region28: #{tpu_custom_call.1} parent=15 // pred_fallthru
          _
      $region16: #{tpu_custom_call.1} parent=5 // pred_fallthru
        _
      %p274 = scmp.le.s32.totalorder 1, %s28
      %p275 = scmp.lt.s32.totalorder %s28, 5
      %p276 = pnand %p274, %p275
      %p277 = pneg %p276
      // Predicated region
      $region29: #{tpu_custom_call.1} parent=5 // pred_check
        _
      $region30: #{tpu_custom_call.1} parent=5 // pred_check_branch
        %279 = sbr.rel (%p276) target = $region32
      $region31: #{tpu_custom_call.1} parent=5 // pred_region
        %s280 = ssub.s32 %s28, 1
        %s281 = sand.u32 %s69, 1
        %s282 = scalar_lea.sflag [#allocation6], %s281
        %s283 = sand.u32 %s69, 1
        %s284 = smul.addr %s283, 8
        %s285 = scalar_lea.vmem [#allocation5], %s284
        // Predicated region
        $region33: #{tpu_custom_call.1} parent=31 // pred_check
          %p286 = pneg %p82
        $region34: #{tpu_custom_call.1} parent=31 // pred_check_branch
          %288 = sbr.rel (%p286) target = $region36
        $region35: #{tpu_custom_call.1} parent=31 // pred_region
          %289 = dma.done %s282, 128
        $region36: #{tpu_custom_call.1} parent=31 // pred_fallthru
          _
        %s290 = sand.u32 %s33, 1
        %s291 = scalar_lea.sflag [#allocation9], %s290
        %s292 = sand.u32 %s113, 1
        %s293 = smul.addr %s292, 64
        %s294 = scalar_lea.vmem [#allocation8], %s293
        // Predicated region
        $region37: #{tpu_custom_call.1} parent=31 // pred_check
          %p295 = pneg %p126
        $region38: #{tpu_custom_call.1} parent=31 // pred_check_branch
          %297 = sbr.rel (%p295) target = $region40
        $region39: #{tpu_custom_call.1} parent=31 // pred_region
          %298 = dma.done %s291, 1024
        $region40: #{tpu_custom_call.1} parent=31 // pred_fallthru
          _
        %s299 = sand.u32 %s33, 1
        %s300 = scalar_lea.sflag [#allocation9], %s299
        %s301 = sand.u32 %s139, 1
        %s302 = smul.addr %s301, 8
        %s303 = scalar_lea.vmem [#allocation10], %s302
        // Predicated region
        $region41: #{tpu_custom_call.1} parent=31 // pred_check
          %p304 = pneg %p152
        $region42: #{tpu_custom_call.1} parent=31 // pred_check_branch
          %306 = sbr.rel (%p304) target = $region44
        $region43: #{tpu_custom_call.1} parent=31 // pred_region
          %307 = dma.done %s300, 128
        $region44: #{tpu_custom_call.1} parent=31 // pred_fallthru
          _
        %s308 = sand.u32 %s69, 1
        %s309 = scalar_lea.sflag [#allocation6], %s308
        %s310 = sand.u32 %s69, 1
        %s311 = smul.addr %s310, 8
        %s312 = scalar_lea.vmem [#allocation5], %s311
        %p313 = pneg %p82
        %p314 = pneg %p79
        %s315 = sand.u32 %s33, 1
        %s316 = scalar_lea.sflag [#allocation9], %s315
        %s317 = sand.u32 %s113, 1
        %s318 = smul.addr %s317, 64
        %s319 = scalar_lea.vmem [#allocation8], %s318
        %p320 = pneg %p126
        %p321 = pneg %p123
        %s322 = sand.u32 %s33, 1
        %s323 = scalar_lea.sflag [#allocation9], %s322
        %s324 = sand.u32 %s139, 1
        %s325 = smul.addr %s324, 8
        %s326 = scalar_lea.vmem [#allocation10], %s325
        %p327 = pneg %p152
        %p328 = pneg %p149
        %p329 = pneg %p178
        %p330 = pneg %p175
        %s331 = sand.u32 %s165, 1
        %s332 = scalar_lea.sflag [#allocation7], %s331
        %s333 = sand.u32 %s165, 1
        %s334 = smul.addr %s333, 16
        %s335 = scalar_lea.vmem [#allocation11], %s334
        %s336 = sshra.s32 %s38, 7
        %s337 = sand.u32 %s38, 127
        %s338 = sadd.s32 %s336, %s37
        %s339 = smul.u32 %s338, 128
        %s340 = sshra.s32 %s38, 7
        %s341 = sand.u32 %s38, 127
        %s342 = sadd.s32 %s339, %s341
        %s343 = sld [smem:[#allocation3 + %s342]]
        %s344 = sshra.s32 %s38, 7
        %s345 = sand.u32 %s38, 127
        %s346 = sadd.s32 %s344, %s37
        %s347 = smul.u32 %s346, 128
        %s348 = sshra.s32 %s38, 7
        %s349 = sand.u32 %s38, 127
        %s350 = sadd.s32 %s347, %s349
        %s351 = sld [smem:[#allocation3 + %s350]]
        %s352 = smul.u32 16, %s351
        %p354 = scmp.eq.s32.totalorder %s38, 0
        // Predicated region
        $region45: #{tpu_custom_call.1} parent=31 // pred_check
          %p355 = pneg %p354
        $region46: #{tpu_custom_call.1} parent=31 // pred_check_branch
          %357 = sbr.rel (%p355) target = $region48
        $region47: #{tpu_custom_call.1} parent=31 // pred_region
          %358 = vst [vmem:[%s335] sm:$0xff] 0.0
          %359 = vst [vmem:[%s335 + $0x8] sm:$0xff] 0.0
        $region48: #{tpu_custom_call.1} parent=31 // pred_fallthru
          _
        %s360 = sld [smem:[#allocation4 + %s37]]
        %p361 = scmp.lt.s32.totalorder %s38, %s360
        // Predicated region
        $region49: #{tpu_custom_call.1} parent=31 // pred_check
          %p362 = pneg %p361
        $region50: #{tpu_custom_call.1} parent=31 // pred_check_branch
          %364 = sbr.rel (%p362) target = $region52
        $region51: #{tpu_custom_call.1} parent=31 // pred_region
          %v365 = vld [vmem:[%s335] sm:$0xff]
          %v366 = vld [vmem:[%s335 + $0x8] sm:$0xff]
          %v367 = vld [vmem:[%s285] sm:$0xf]
          %v368 = vld [vmem:[%s285 + $0x4] sm:$0xf]
          %v369 = vld [vmem:[%s294] sm:$0xf]
          %v370 = vld [vmem:[%s294 + $0x4] sm:$0xf]
          %v371 = vld [vmem:[%s294 + $0x8] sm:$0xf]
          %v372 = vld [vmem:[%s294 + $0xc] sm:$0xf]
          %v373 = vld [vmem:[%s294 + $0x10] sm:$0xf]
          %v374 = vld [vmem:[%s294 + $0x14] sm:$0xf]
          %v375 = vld [vmem:[%s294 + $0x18] sm:$0xf]
          %v376 = vld [vmem:[%s294 + $0x1c] sm:$0xf]
          %v377 = vld [vmem:[%s294 + $0x20] sm:$0xf]
          %v378 = vld [vmem:[%s294 + $0x24] sm:$0xf]
          %v379 = vld [vmem:[%s294 + $0x28] sm:$0xf]
          %v380 = vld [vmem:[%s294 + $0x2c] sm:$0xf]
          %v381 = vld [vmem:[%s294 + $0x30] sm:$0xf]
          %v382 = vld [vmem:[%s294 + $0x34] sm:$0xf]
          %v383 = vld [vmem:[%s294 + $0x38] sm:$0xf]
          %v384 = vld [vmem:[%s294 + $0x3c] sm:$0xf]
          %v387 = vunpack.c.l.b16 %v367
          %v388 = vunpack.c.l.b16 %v368
          %v389 = vpack.c.b16 %v388, %v387
          %v407 = vunpack.c.l.b16 %v369
          %v408 = vunpack.c.l.b16 %v370
          %v409 = vunpack.c.l.b16 %v371
          %v410 = vunpack.c.l.b16 %v372
          %v411 = vunpack.c.l.b16 %v373
          %v412 = vunpack.c.l.b16 %v374
          %v413 = vunpack.c.l.b16 %v375
          %v414 = vunpack.c.l.b16 %v376
          %v415 = vunpack.c.l.b16 %v377
          %v416 = vunpack.c.l.b16 %v378
          %v417 = vunpack.c.l.b16 %v379
          %v418 = vunpack.c.l.b16 %v380
          %v419 = vunpack.c.l.b16 %v381
          %v420 = vunpack.c.l.b16 %v382
          %v421 = vunpack.c.l.b16 %v383
          %v422 = vunpack.c.l.b16 %v384
          %v423 = vpack.c.b16 %v408, %v407
          %v424 = vpack.c.b16 %v410, %v409
          %v425 = vpack.c.b16 %v412, %v411
          %v426 = vpack.c.b16 %v414, %v413
          %v427 = vpack.c.b16 %v416, %v415
          %v428 = vpack.c.b16 %v418, %v417
          %v429 = vpack.c.b16 %v420, %v419
          %v430 = vpack.c.b16 %v422, %v421
          %439 = vmatprep.subr.bf16.mxu0 0
          %440 = vmatpush1.bf16.msra.mxu0 %v430
          %441 = vmatprep.subr.bf16.mxu0 0
          %442 = vmatpush1.bf16.msra.mxu0 %v429
          %443 = vmatprep.subr.bf16.mxu0 0
          %444 = vmatpush1.bf16.msra.mxu0 %v428
          %445 = vmatprep.subr.bf16.mxu0 0
          %446 = vmatpush1.bf16.msra.mxu0 %v427
          %447 = vmatprep.subr.bf16.mxu0 0
          %448 = vmatpush1.bf16.msra.mxu0 %v426
          %449 = vmatprep.subr.bf16.mxu0 0
          %450 = vmatpush1.bf16.msra.mxu0 %v425
          %451 = vmatprep.subr.bf16.mxu0 0
          %452 = vmatpush1.bf16.msra.mxu0 %v424
          %453 = vmatprep.subr.bf16.mxu0 0
          %454 = vmatpush1.bf16.msra.mxu0 %v423
          %455 = vmatprep.subr.bf16.mxu0 0
          %456 = vmatpush2.bf16.msra.mxu0 0
          %457 = vmatprep.subr.bf16.mxu0 0
          %458 = vmatpush2.bf16.msra.mxu0 0
          %459 = vmatprep.subr.bf16.mxu0 0
          %460 = vmatpush2.bf16.msra.mxu0 0
          %461 = vmatprep.subr.bf16.mxu0 0
          %462 = vmatpush2.bf16.msra.mxu0 0
          %463 = vmatprep.subr.bf16.mxu0 0
          %464 = vmatpush2.bf16.msra.mxu0 0
          %465 = vmatprep.subr.bf16.mxu0 0
          %466 = vmatpush2.bf16.msra.mxu0 0
          %467 = vmatprep.subr.bf16.mxu0 0
          %468 = vmatpush2.bf16.msra.mxu0 0
          %469 = vmatprep.subr.bf16.mxu0 0
          %470 = vmatpush2.bf16.msra.mxu0 0
          %471 = vmatprep.mubr.bf16.mxu0 0
          %472 = vmatmul.mubr.bf16.gmra.mxu0 %v389
          %v473 = vpop.f32.mrf.mxu0
          %v474 = vadd.f32 0.0, %v473
          %v475 = vpop.f32.mrf.mxu0
          %v476 = vpop.f32.mrf.mxu0
          %v477 = vadd.f32 0.0, %v476
          %v478 = vpop.f32.mrf.mxu0
          %479 = vdwg.mxu0
          %v480 = vadd.f32 %v365, %v474
          %v481 = vadd.f32 %v366, %v477
          %482 = vst [vmem:[%s335] sm:$0xff] %v480
          %483 = vst [vmem:[%s335 + $0x8] sm:$0xff] %v481
        $region52: #{tpu_custom_call.1} parent=31 // pred_fallthru
          _
        %p484 = scmp.eq.s32.totalorder %s38, 1
        // Predicated region
        $region53: #{tpu_custom_call.1} parent=31 // pred_check
          %p485 = pneg %p484
        $region54: #{tpu_custom_call.1} parent=31 // pred_check_branch
          %487 = sbr.rel (%p485) target = $region56
        $region55: #{tpu_custom_call.1} parent=31 // pred_region
          %v488 = vld [vmem:[%s335] sm:$0xff]
          %v489 = vld [vmem:[%s335 + $0x8] sm:$0xff]
          %v490 = vadd.f32 %v488, %v489
          %v491 = vrot.slane %v490, 4
          %v492 = vadd.f32 %v490, %v491
          %v493 = vrot.slane %v492, 2
          %v494 = vadd.f32 %v492, %v493
          %v495 = vrot.slane %v494, 1
          %v496 = vadd.f32 %v494, %v495
          %v497 = vmul.f32 %v496, 0.16666667
          %v498 = vmul.f32 %v488, %v488
          %v499 = vmul.f32 %v489, %v489
          %v500 = vadd.f32 %v498, %v499
          %v501 = vrot.slane %v500, 4
          %v502 = vadd.f32 %v500, %v501
          %v503 = vrot.slane %v502, 2
          %v504 = vadd.f32 %v502, %v503
          %v505 = vrot.slane %v504, 1
          %v506 = vadd.f32 %v504, %v505
          %v507 = vmul.f32 %v506, 0.16666667
          %v508 = vmul.f32 %v497, %v497
          %v509 = vsub.f32 %v507, %v508
          %v510 = vmax.f32 %v509, 0.0
          %v511 = vsub.f32 %v488, %v497
          %v512 = vsub.f32 %v489, %v497
          %v513 = vadd.f32 %v510, 1e-05
          %v514 = vrsqrt.pop %v513
          %v515 = vmul.f32 %v511, %v514
          %v516 = vmul.f32 %v512, %v514
          %v517 = vld [vmem:[%s303] sm:$0x1]
          %v518 = vlaneseq
          %v519 = vshrl.u32 %v518, 7
          %v520 = vsub.s32 0, %v519
          %v521 = vrot.slane %v517, %v520
          %v522 = vmul.f32 %v521, %v515
          %v523 = vmul.f32 %v521, %v516
          %v524 = vld [vmem:[%s303 + $0x1] sm:$0x1]
          %v525 = vlaneseq
          %v526 = vshrl.u32 %v525, 7
          %v527 = vsub.s32 0, %v526
          %v528 = vrot.slane %v524, %v527
          %v529 = vadd.f32 %v522, %v528
          %v530 = vadd.f32 %v523, %v528
          %v531 = vxor.u32 %v529, 2147483648
          %v532 = vxor.u32 %v530, 2147483648
          %v533 = vmul.f32 %v531, 1.442695
          %v534 = vpow.pop %v533
          %v535 = vmul.f32 %v532, 1.442695
          %v536 = vpow.pop %v535
          %v537 = vadd.f32 %v534, 1.0
          %v538 = vadd.f32 %v536, 1.0
          %v539 = vrcp.pop %v537
          %v540 = vmul.f32 1.0, %v539
          %v541 = vrcp.pop %v538
          %v542 = vmul.f32 1.0, %v541
          %v543 = vmul.f32 %v529, %v540
          %v544 = vmul.f32 %v530, %v542
          %545 = vst [vmem:[%s335] sm:$0xff] %v543
          %546 = vst [vmem:[%s335 + $0x8] sm:$0xff] %v544
        $region56: #{tpu_custom_call.1} parent=31 // pred_fallthru
          _
        %s547 = sand.u32 %s165, 1
        %s548 = scalar_lea.sflag [#allocation7], %s547
        %s549 = sand.u32 %s165, 1
        %s550 = smul.addr %s549, 16
        %s551 = scalar_lea.vmem [#allocation11], %s550
        // Predicated region
        $region57: #{tpu_custom_call.1} parent=31 // pred_check
          %p552 = pneg %p175
        $region58: #{tpu_custom_call.1} parent=31 // pred_check_branch
          %554 = sbr.rel (%p552) target = $region60
        $region59: #{tpu_custom_call.1} parent=31 // pred_region
          %s556 = ssub.s32 256, 256
          %557 = vsyncadd %s548, %s556
          %s558 = smul.addr %s37, 128
          %s559 = scalar_lea.hbm %s5, %s558
          %s560 = sshll.u32 %s551, 4
          %s561 = int_to_ptr.vmem [resolvable:$true] %s560
          %566 = dma.vmem_to_hbm [thread:$0]  %s561, 256, %s559, %s548, 128, 256, 8
        $region60: #{tpu_custom_call.1} parent=31 // pred_fallthru
          _
      $region32: #{tpu_custom_call.1} parent=5 // pred_fallthru
        _
      %p567 = scmp.le.s32.totalorder 2, %s28
      // Predicated region
      $region61: #{tpu_custom_call.1} parent=5 // pred_check
        %p568 = pneg %p567
      $region62: #{tpu_custom_call.1} parent=5 // pred_check_branch
        %570 = sbr.rel (%p568) target = $region64
      $region63: #{tpu_custom_call.1} parent=5 // pred_region
        %s571 = ssub.s32 %s28, 2
        // Predicated region
        $region65: #{tpu_custom_call.1} parent=63 // pred_check
          %p572 = pneg %p181
        $region66: #{tpu_custom_call.1} parent=63 // pred_check_branch
          %574 = sbr.rel (%p572) target = $region68
        $region67: #{tpu_custom_call.1} parent=63 // pred_region
          %s575 = sand.u32 %s166, 1
          %s576 = scalar_lea.sflag [#allocation7], %s575
          %s577 = sand.u32 %s166, 1
          %s578 = smul.addr %s577, 16
          %s579 = scalar_lea.vmem [#allocation11], %s578
          %580 = dma.done %s576, 256
        $region68: #{tpu_custom_call.1} parent=63 // pred_fallthru
          _
      $region64: #{tpu_custom_call.1} parent=5 // pred_fallthru
        _
    $region6: #{tpu_custom_call.1} parent=1 // loop_footer
      %s32 = sadd.s32 1, %s28
    $region7: #{tpu_custom_call.1} parent=1 // loop_footer_branch
      %27 = sbr.rel target = $region3
    $region8: #{tpu_custom_call.1} parent=1 // loop_exit
      _
    %581 = vsyncpa [#allocation6], 1
    %s582 = scalar_lea.sflag [#allocation6], 1
    %583 = vsyncpa %s582, 1
    %584 = vsyncpa [#allocation9], 1
    %s585 = scalar_lea.sflag [#allocation9], 1
    %586 = vsyncpa %s585, 1
    %587 = vsyncpa [#allocation7], 1
    %s588 = scalar_lea.sflag [#allocation7], 1
    %589 = vsyncpa %s588, 1

</llo_original>
